<compile_context>
chip_gen: v7x
topology: tpu7x:2x2x1
jax: 0.10.0
libtpu: 0.0.40
codegen_flags: <defaults>
</compile_context>

<pallas_src>
import functools

import jax
import jax.numpy as jnp
import numpy as np
from jax.experimental import pallas as pl
from jax.experimental.pallas import tpu as pltpu

EPS = 1e-5
NEG_SLOPE = 0.2
LANE = 128


def _leaky(x):
    return jnp.where(x >= 0, x, NEG_SLOPE * x)


def _round_up(n, m):
    return ((n + m - 1) // m) * m


def _pad2(a, rows, cols, dtype=None):
    dt = a.dtype if dtype is None else dtype
    out = jnp.zeros((rows, cols), dt)
    r, c = a.shape
    return out.at[:r, :c].set(a.astype(dt))


def _pick_hidden_tile(B, fin_p, n_p, fout_p, v2_rows, has_fc3, budget=12 << 20):
    """Largest hidden tile (multiple of 128 dividing n_p) whose working set fits.

    Prefers tk == n_p (single grid step, everything resident).  Budget is kept
    under the default scoped VMEM limit on all generations (v5e: 16 MiB)."""
    m = n_p // LANE
    candidates = sorted({LANE * d for d in range(1, m + 1) if m % d == 0},
                        reverse=True)

    def need(tk):
        fixed = (B * fin_p * 2                               # x bf16 (resident)
                 + (0 if has_fc3 else B * fout_p * 4)        # x f32 shortcut
                 + v2_rows * fout_p * 4                      # packed v2 (resident)
                 + (fin_p * fout_p * 2 if has_fc3 else 0)    # w3 (resident)
                 + 2 * B * fout_p * 4)                       # output + accumulator
        stream = 2 * (fin_p * tk * 2 + tk * fout_p * 2 + 3 * tk * 4)  # double-buffered
        return fixed + stream

    for tk in candidates:
        if need(tk) <= budget:
            return tk
    return LANE


def _make_kernel(batch, has_fc3, final_nl):
    inv_b = 1.0 / batch

    def _bn(h, gamma, beta):
        # PyTorch training-mode BatchNorm1d: biased variance over the batch.
        # Two-pass (centered) statistics in f32; rsqrt goes to the EUP.
        mean = jnp.sum(h, axis=0, keepdims=True) * inv_b
        c = h - mean
        var = jnp.sum(c * c, axis=0, keepdims=True) * inv_b
        inv = jax.lax.rsqrt(var + EPS)
        return c * (inv * gamma) + beta

    def kernel(*refs):
        if has_fc3:
            xbf_ref, w1_ref, v1_ref, w2_ref, v2_ref, w3_ref, o_ref, acc_ref = refs
        else:
            xbf_ref, xf_ref, w1_ref, v1_ref, w2_ref, v2_ref, o_ref, acc_ref = refs

        k = pl.program_id(0)

        @pl.when(k == 0)
        def _():
            acc_ref[...] = jnp.zeros_like(acc_ref)

        x_bf = xbf_ref[...]                    # pre-cast bf16, resident in VMEM
        v1 = v1_ref[...]                       # [3, tk] = [b1; g1; be1]

        # fc1 (this hidden tile) -> bn1 -> leaky_relu, full batch, f32 math.
        h = jnp.dot(x_bf, w1_ref[...], preferred_element_type=jnp.float32) + v1[0:1]
        h = _leaky(_bn(h, v1[1:2], v1[2:3]))

        # fc2 partial contribution of this hidden tile into the resident
        # full-width (B, Fout_pad) f32 accumulator.
        acc_ref[...] += jnp.dot(h.astype(jnp.bfloat16), w2_ref[...],
                                preferred_element_type=jnp.float32)

        @pl.when(k == pl.num_programs(0) - 1)
        def _():
            v2 = v2_ref[...]                   # [3 or 4, Fout_pad] = [b2; g2; be2(; b3)]
            o = _bn(acc_ref[...] + v2[0:1], v2[1:2], v2[2:3])
            if has_fc3:
                xin = _leaky(
                    jnp.dot(x_bf, w3_ref[...], preferred_element_type=jnp.float32)
                    + v2[3:4])
            else:
                xin = xf_ref[...]              # identity shortcut (f32 x, resident)
            out = xin + o
            if final_nl:
                out = _leaky(out)
            o_ref[...] = out.astype(o_ref.dtype)

    return kernel


def prepare_params(params):
    """Pad to lane-dense shapes and pre-cast to bf16 ONCE, outside the call path."""
    fin, n_neurons = params["w1"].shape
    fout = params["w2"].shape[1]
    has_fc3 = "w3" in params
    assert has_fc3 == (fin != fout)

    fin_p = _round_up(fin, LANE)
    n_p = _round_up(n_neurons, LANE)
    fout_p = _round_up(fout, LANE)

    arrays = {
        "w1": _pad2(params["w1"], fin_p, n_p, jnp.bfloat16),
        "w2": _pad2(params["w2"], n_p, fout_p, jnp.bfloat16),
        "v1": _pad2(jnp.concatenate([params["b1"], params["g1"], params["be1"]], 0),
                    3, n_p),
    }
    v2_rows = [params["b2"], params["g2"], params["be2"]]
    if has_fc3:
        v2_rows.append(params["b3"])
        arrays["w3"] = _pad2(params["w3"], fin_p, fout_p, jnp.bfloat16)
    arrays["v2"] = _pad2(jnp.concatenate(v2_rows, 0), len(v2_rows), fout_p)

    return {"arrays": arrays, "fout": fout, "has_fc3": has_fc3}


@functools.partial(jax.jit,
                   static_argnames=("fout", "has_fc3", "final_nl", "hidden_tile"))
def _resblock_call(x, arrays, fout, has_fc3, final_nl, hidden_tile):
    B, _ = x.shape
    fin_p, n_p = arrays["w1"].shape
    fout_p = arrays["w2"].shape[1]
    v2_rows = arrays["v2"].shape[0]

    if hidden_tile is None:
        tk = _pick_hidden_tile(B, fin_p, n_p, fout_p, v2_rows, has_fc3)
    else:
        assert hidden_tile % LANE == 0 and n_p % hidden_tile == 0
        tk = hidden_tile
    nk = n_p // tk

    # Cast/pad x once per call in the wrapper (not inside the kernel body).
    x_bf = _pad2(x, B, fin_p, jnp.bfloat16)

    in_arrays = [x_bf]
    in_specs = [pl.BlockSpec((B, fin_p), lambda k: (0, 0))]        # x bf16, resident
    if not has_fc3:
        in_arrays.append(_pad2(x, B, fout_p))                      # f32 identity shortcut
        in_specs.append(pl.BlockSpec((B, fout_p), lambda k: (0, 0)))
    in_arrays += [arrays["w1"], arrays["v1"], arrays["w2"], arrays["v2"]]
    in_specs += [
        pl.BlockSpec((fin_p, tk), lambda k: (0, k)),               # w1 hidden tile
        pl.BlockSpec((3, tk), lambda k: (0, k)),                   # [b1; g1; be1]
        pl.BlockSpec((tk, fout_p), lambda k: (k, 0)),              # w2 hidden tile
        pl.BlockSpec((v2_rows, fout_p), lambda k: (0, 0)),         # [b2; g2; be2(; b3)]
    ]
    if has_fc3:
        in_arrays.append(arrays["w3"])
        in_specs.append(pl.BlockSpec((fin_p, fout_p), lambda k: (0, 0)))  # w3, resident

    kernel = _make_kernel(B, has_fc3, final_nl)

    out_p = pl.pallas_call(
        kernel,
        out_shape=jax.ShapeDtypeStruct((B, fout_p), jnp.float32),
        grid_spec=pltpu.PrefetchScalarGridSpec(
            num_scalar_prefetch=0,
            grid=(nk,),
            in_specs=in_specs,
            out_specs=pl.BlockSpec((B, fout_p), lambda k: (0, 0)),
            scratch_shapes=[pltpu.VMEM((B, fout_p), jnp.float32)],  # fc2 accumulator
        ),
        compiler_params=pltpu.CompilerParams(
            dimension_semantics=("arbitrary",),
        ),
    )(*in_arrays)

    return out_p[:, :fout]


def resblock_pallas(x, prepared, final_nl=True, hidden_tile=None):
    return _resblock_call(x, prepared["arrays"], prepared["fout"],
                          prepared["has_fc3"], final_nl, hidden_tile)


def resblock_ref(x, params, final_nl=True, matmul_dtype=None):
    # Pure-JAX reference mirroring the PyTorch forward (training-mode BN).
    # matmul_dtype=jnp.bfloat16 mirrors the kernel's MXU input precision.
    def mm(a, b):
        if matmul_dtype is not None:
            a = a.astype(matmul_dtype)
            b = b.astype(matmul_dtype)
        return jnp.dot(a, b, preferred_element_type=jnp.float32)

    def bn(h, g, b):
        m = jnp.mean(h, axis=0, keepdims=True)
        v = jnp.mean((h - m) ** 2, axis=0, keepdims=True)
        return (h - m) / jnp.sqrt(v + EPS) * g + b

    fin, fout = params["w1"].shape[0], params["w2"].shape[1]
    if fin == fout:
        xin = x
    else:
        xin = _leaky(mm(x, params["w3"]) + params["b3"])
    h = _leaky(bn(mm(x, params["w1"]) + params["b1"], params["g1"], params["be1"]))
    o = bn(mm(h, params["w2"]) + params["b2"], params["g2"], params["be2"])
    out = xin + o
    return _leaky(out) if final_nl else out


def init_params(key, fin, fout, n_neurons):
    ks = jax.random.split(key, 3)

    def lin(k, i, o):
        bound = 1.0 / np.sqrt(i)
        kw, kb = jax.random.split(k)
        w = jax.random.uniform(kw, (i, o), jnp.float32, -bound, bound)
        b = jax.random.uniform(kb, (1, o), jnp.float32, -bound, bound)
        return w, b

    w1, b1 = lin(ks[0], fin, n_neurons)
    w2, b2 = lin(ks[1], n_neurons, fout)
    p = dict(
        w1=w1, b1=b1,
        g1=jnp.ones((1, n_neurons), jnp.float32),
        be1=jnp.zeros((1, n_neurons), jnp.float32),
        w2=w2, b2=b2,
        g2=jnp.ones((1, fout), jnp.float32),
        be2=jnp.zeros((1, fout), jnp.float32),
    )
    if fin != fout:
        w3, b3 = lin(ks[2], fin, fout)
        p.update(w3=w3, b3=b3)
    return p


if __name__ == "__main__":
    key = jax.random.PRNGKey(0)
    k1x, k1p, k2x, k2p = jax.random.split(key, 4)

    # Case 1: Fin != Fout (fc3 shortcut), final LeakyReLU.  Single grid step.
    B, Fin, Fout, N = 8, 16, 32, 64
    x1 = jax.random.normal(k1x, (B, Fin), jnp.float32)
    p1 = init_params(k1p, Fin, Fout, N)
    prep1 = prepare_params(p1)
    out1 = jax.block_until_ready(resblock_pallas(x1, prep1, final_nl=True))

    # Primary correctness check: reference with the same (bf16-input, f32-accum) matmuls.
    ref1_match = resblock_ref(x1, p1, True, matmul_dtype=jnp.bfloat16)
    np.testing.assert_allclose(np.asarray(out1), np.asarray(ref1_match),
                               rtol=2e-3, atol=2e-3)
    # Coarse sanity check vs the full-f32 module semantics (documents bf16 MXU loss).
    ref1_f32 = resblock_ref(x1, p1, True)
    np.testing.assert_allclose(np.asarray(out1), np.asarray(ref1_f32),
                               rtol=0.15, atol=0.15)

    # Case 2: identity shortcut (Fin == Fout), no final nonlinearity.  Single step.
    B2, F2, N2 = 8, 192, 256
    x2 = jax.random.normal(k2x, (B2, F2), jnp.float32)
    p2 = init_params(k2p, F2, F2, N2)
    prep2 = prepare_params(p2)
    out2 = jax.block_until_ready(resblock_pallas(x2, prep2, final_nl=False))
    ref2_match = resblock_ref(x2, p2, False, matmul_dtype=jnp.bfloat16)
    np.testing.assert_allclose(np.asarray(out2), np.asarray(ref2_match),
                               rtol=2e-3, atol=2e-3)

    # Case 3: force the hidden-tiled fallback (nk=2) to exercise the accumulator path.
    out3 = jax.block_until_ready(resblock_pallas(x2, prep2, final_nl=False,
                                                 hidden_tile=128))
    np.testing.assert_allclose(np.asarray(out3), np.asarray(ref2_match),
                               rtol=2e-3, atol=2e-3)

    print("KERNEL_OK")
</pallas_src>

<mosaic_0001>
module attributes {stable_mosaic.version = 11 : i64} {
  func.func @kernel(%arg0: i32, %arg1: memref<8x128xbf16, #tpu.memory_space<vmem>>, %arg2: memref<128x128xbf16, #tpu.memory_space<vmem>>, %arg3: memref<3x128xf32, #tpu.memory_space<vmem>>, %arg4: memref<128x128xbf16, #tpu.memory_space<vmem>>, %arg5: memref<4x128xf32, #tpu.memory_space<vmem>>, %arg6: memref<128x128xbf16, #tpu.memory_space<vmem>>, %arg7: memref<8x128xf32, #tpu.memory_space<vmem>>, %arg8: memref<8x128xf32, #tpu.memory_space<vmem>>) attributes {dimension_semantics = [#tpu.dimension_semantics<arbitrary>], iteration_bounds = array<i64: 1>, scalar_prefetch = 0 : i64, scratch_operands = 1 : i64, tpu.core_type = #tpu.core_type<tc>, window_params = [{pipeline_mode = #tpu.pipeline_mode<synchronous>, transform_indices = @transform_0, window_bounds = array<i64: 8, 128>}, {transform_indices = @transform_1, window_bounds = array<i64: 128, 128>}, {transform_indices = @transform_2, window_bounds = array<i64: 3, 128>}, {transform_indices = @transform_3, window_bounds = array<i64: 128, 128>}, {pipeline_mode = #tpu.pipeline_mode<synchronous>, transform_indices = @transform_4, window_bounds = array<i64: 4, 128>}, {pipeline_mode = #tpu.pipeline_mode<synchronous>, transform_indices = @transform_5, window_bounds = array<i64: 128, 128>}, {pipeline_mode = #tpu.pipeline_mode<synchronous>, transform_indices = @transform_6, window_bounds = array<i64: 8, 128>}]} {
    %c0_i32 = arith.constant 0 : i32
    %0 = arith.cmpi eq, %arg0, %c0_i32 : i32
    %1 = arith.extui %0 : i1 to i32
    %c0_i32_0 = arith.constant 0 : i32
    %2 = arith.cmpi ne, %1, %c0_i32_0 : i32
    scf.if %2 {
      %cst_22 = arith.constant 0.000000e+00 : f32
      %45 = vector.broadcast %cst_22 : f32 to vector<8x128xf32>
      %c0_23 = arith.constant 0 : index
      %c0_24 = arith.constant 0 : index
      %46 = vector.load %arg8[%c0_23, %c0_24] : memref<8x128xf32, #tpu.memory_space<vmem>>, vector<8x128xf32>
      tpu.vector_store %arg8[%c0_23, %c0_24], %45 {strides = array<i32>} : memref<8x128xf32, #tpu.memory_space<vmem>>, vector<8x128xf32>,
    } else {
    }
    %c0 = arith.constant 0 : index
    %c0_1 = arith.constant 0 : index
    %3 = vector.load %arg1[%c0, %c0_1] : memref<8x128xbf16, #tpu.memory_space<vmem>>, vector<8x128xbf16>
    %c0_2 = arith.constant 0 : index
    %c0_3 = arith.constant 0 : index
    %4 = vector.load %arg3[%c0_2, %c0_3] : memref<3x128xf32, #tpu.memory_space<vmem>>, vector<3x128xf32>
    %c0_4 = arith.constant 0 : index
    %c0_5 = arith.constant 0 : index
    %5 = vector.load %arg2[%c0_4, %c0_5] : memref<128x128xbf16, #tpu.memory_space<vmem>>, vector<128x128xbf16>
    %cst = arith.constant dense<0.000000e+00> : vector<8x128xf32>
    %6 = tpu.matmul %3, %5, %cst {dimension_numbers = #tpu.dot_dimension_numbers<[1], [0], [0], [1], [0, 0, 1, 1], [], []>} : vector<8x128xbf16>, vector<128x128xbf16>, vector<8x128xf32> -> vector<8x128xf32>
    %7 = vector.extract_strided_slice %4 {offsets = [0, 0], sizes = [1, 128], strides = [1, 1]} : vector<3x128xf32> to vector<1x128xf32>
    %8 = vector.broadcast %7 : vector<1x128xf32> to vector<8x128xf32>
    %9 = arith.addf %6, %8 : vector<8x128xf32>
    %10 = vector.extract_strided_slice %4 {offsets = [1, 0], sizes = [1, 128], strides = [1, 1]} : vector<3x128xf32> to vector<1x128xf32>
    %11 = vector.extract_strided_slice %4 {offsets = [2, 0], sizes = [1, 128], strides = [1, 1]} : vector<3x128xf32> to vector<1x128xf32>
    %cst_6 = arith.constant dense<0.000000e+00> : vector<128xf32>
    %12 = vector.multi_reduction <add>, %9, %cst_6 [0] : vector<8x128xf32> to vector<128xf32>
    %13 = vector.shape_cast %12 : vector<128xf32> to vector<1x128xf32>
    %cst_7 = arith.constant 1.250000e-01 : f32
    %14 = vector.broadcast %cst_7 : f32 to vector<1x128xf32>
    %15 = arith.mulf %13, %14 : vector<1x128xf32>
    %16 = vector.broadcast %15 : vector<1x128xf32> to vector<8x128xf32>
    %17 = arith.subf %9, %16 : vector<8x128xf32>
    %18 = arith.mulf %17, %17 : vector<8x128xf32>
    %cst_8 = arith.constant dense<0.000000e+00> : vector<128xf32>
    %19 = vector.multi_reduction <add>, %18, %cst_8 [0] : vector<8x128xf32> to vector<128xf32>
    %20 = vector.shape_cast %19 : vector<128xf32> to vector<1x128xf32>
    %cst_9 = arith.constant 1.250000e-01 : f32
    %21 = vector.broadcast %cst_9 : f32 to vector<1x128xf32>
    %22 = arith.mulf %20, %21 : vector<1x128xf32>
    %cst_10 = arith.constant 9.99999974E-6 : f32
    %23 = vector.broadcast %cst_10 : f32 to vector<1x128xf32>
    %24 = arith.addf %22, %23 : vector<1x128xf32>
    %25 = math.rsqrt %24 : vector<1x128xf32>
    %26 = arith.mulf %25, %10 : vector<1x128xf32>
    %27 = vector.broadcast %26 : vector<1x128xf32> to vector<8x128xf32>
    %28 = arith.mulf %17, %27 : vector<8x128xf32>
    %29 = vector.broadcast %11 : vector<1x128xf32> to vector<8x128xf32>
    %30 = arith.addf %28, %29 : vector<8x128xf32>
    %cst_11 = arith.constant 0.000000e+00 : f32
    %31 = vector.broadcast %cst_11 : f32 to vector<8x128xf32>
    %32 = arith.cmpf oge, %30, %31 : vector<8x128xf32>
    %cst_12 = arith.constant 2.000000e-01 : f32
    %33 = vector.broadcast %cst_12 : f32 to vector<8x128xf32>
    %34 = arith.mulf %33, %30 : vector<8x128xf32>
    %35 = arith.select %32, %30, %34 : vector<8x128xi1>, vector<8x128xf32>
    %c0_13 = arith.constant 0 : index
    %c0_14 = arith.constant 0 : index
    %36 = vector.load %arg8[%c0_13, %c0_14] : memref<8x128xf32, #tpu.memory_space<vmem>>, vector<8x128xf32>
    %37 = arith.truncf %35 : vector<8x128xf32> to vector<8x128xbf16>
    %c0_15 = arith.constant 0 : index
    %c0_16 = arith.constant 0 : index
    %38 = vector.load %arg4[%c0_15, %c0_16] : memref<128x128xbf16, #tpu.memory_space<vmem>>, vector<128x128xbf16>
    %cst_17 = arith.constant dense<0.000000e+00> : vector<8x128xf32>
    %39 = tpu.matmul %37, %38, %cst_17 {dimension_numbers = #tpu.dot_dimension_numbers<[1], [0], [0], [1], [0, 0, 1, 1], [], []>} : vector<8x128xbf16>, vector<128x128xbf16>, vector<8x128xf32> -> vector<8x128xf32>
    %40 = arith.addf %36, %39 : vector<8x128xf32>
    %c0_18 = arith.constant 0 : index
    %c0_19 = arith.constant 0 : index
    %41 = vector.load %arg8[%c0_18, %c0_19] : memref<8x128xf32, #tpu.memory_space<vmem>>, vector<8x128xf32>
    tpu.vector_store %arg8[%c0_18, %c0_19], %40 {strides = array<i32>} : memref<8x128xf32, #tpu.memory_space<vmem>>, vector<8x128xf32>,
    %c0_i32_20 = arith.constant 0 : i32
    %42 = arith.cmpi eq, %arg0, %c0_i32_20 : i32
    %43 = arith.extui %42 : i1 to i32
    %c0_i32_21 = arith.constant 0 : i32
    %44 = arith.cmpi ne, %43, %c0_i32_21 : i32
    scf.if %44 {
      %c0_22 = arith.constant 0 : index
      %c0_23 = arith.constant 0 : index
      %45 = vector.load %arg5[%c0_22, %c0_23] : memref<4x128xf32, #tpu.memory_space<vmem>>, vector<4x128xf32>
      %c0_24 = arith.constant 0 : index
      %c0_25 = arith.constant 0 : index
      %46 = vector.load %arg8[%c0_24, %c0_25] : memref<8x128xf32, #tpu.memory_space<vmem>>, vector<8x128xf32>
      %47 = vector.extract_strided_slice %45 {offsets = [0, 0], sizes = [1, 128], strides = [1, 1]} : vector<4x128xf32> to vector<1x128xf32>
      %48 = vector.broadcast %47 : vector<1x128xf32> to vector<8x128xf32>
      %49 = arith.addf %46, %48 : vector<8x128xf32>
      %50 = vector.extract_strided_slice %45 {offsets = [1, 0], sizes = [1, 128], strides = [1, 1]} : vector<4x128xf32> to vector<1x128xf32>
      %51 = vector.extract_strided_slice %45 {offsets = [2, 0], sizes = [1, 128], strides = [1, 1]} : vector<4x128xf32> to vector<1x128xf32>
      %cst_26 = arith.constant dense<0.000000e+00> : vector<128xf32>
      %52 = vector.multi_reduction <add>, %49, %cst_26 [0] : vector<8x128xf32> to vector<128xf32>
      %53 = vector.shape_cast %52 : vector<128xf32> to vector<1x128xf32>
      %cst_27 = arith.constant 1.250000e-01 : f32
      %54 = vector.broadcast %cst_27 : f32 to vector<1x128xf32>
      %55 = arith.mulf %53, %54 : vector<1x128xf32>
      %56 = vector.broadcast %55 : vector<1x128xf32> to vector<8x128xf32>
      %57 = arith.subf %49, %56 : vector<8x128xf32>
      %58 = arith.mulf %57, %57 : vector<8x128xf32>
      %cst_28 = arith.constant dense<0.000000e+00> : vector<128xf32>
      %59 = vector.multi_reduction <add>, %58, %cst_28 [0] : vector<8x128xf32> to vector<128xf32>
      %60 = vector.shape_cast %59 : vector<128xf32> to vector<1x128xf32>
      %cst_29 = arith.constant 1.250000e-01 : f32
      %61 = vector.broadcast %cst_29 : f32 to vector<1x128xf32>
      %62 = arith.mulf %60, %61 : vector<1x128xf32>
      %cst_30 = arith.constant 9.99999974E-6 : f32
      %63 = vector.broadcast %cst_30 : f32 to vector<1x128xf32>
      %64 = arith.addf %62, %63 : vector<1x128xf32>
      %65 = math.rsqrt %64 : vector<1x128xf32>
      %66 = arith.mulf %65, %50 : vector<1x128xf32>
      %67 = vector.broadcast %66 : vector<1x128xf32> to vector<8x128xf32>
      %68 = arith.mulf %57, %67 : vector<8x128xf32>
      %69 = vector.broadcast %51 : vector<1x128xf32> to vector<8x128xf32>
      %70 = arith.addf %68, %69 : vector<8x128xf32>
      %c0_31 = arith.constant 0 : index
      %c0_32 = arith.constant 0 : index
      %71 = vector.load %arg6[%c0_31, %c0_32] : memref<128x128xbf16, #tpu.memory_space<vmem>>, vector<128x128xbf16>
      %cst_33 = arith.constant dense<0.000000e+00> : vector<8x128xf32>
      %72 = tpu.matmul %3, %71, %cst_33 {dimension_numbers = #tpu.dot_dimension_numbers<[1], [0], [0], [1], [0, 0, 1, 1], [], []>} : vector<8x128xbf16>, vector<128x128xbf16>, vector<8x128xf32> -> vector<8x128xf32>
      %73 = vector.extract_strided_slice %45 {offsets = [3, 0], sizes = [1, 128], strides = [1, 1]} : vector<4x128xf32> to vector<1x128xf32>
      %74 = vector.broadcast %73 : vector<1x128xf32> to vector<8x128xf32>
      %75 = arith.addf %72, %74 : vector<8x128xf32>
      %cst_34 = arith.constant 0.000000e+00 : f32
      %76 = vector.broadcast %cst_34 : f32 to vector<8x128xf32>
      %77 = arith.cmpf oge, %75, %76 : vector<8x128xf32>
      %cst_35 = arith.constant 2.000000e-01 : f32
      %78 = vector.broadcast %cst_35 : f32 to vector<8x128xf32>
      %79 = arith.mulf %78, %75 : vector<8x128xf32>
      %80 = arith.select %77, %75, %79 : vector<8x128xi1>, vector<8x128xf32>
      %81 = arith.addf %80, %70 : vector<8x128xf32>
      %cst_36 = arith.constant 0.000000e+00 : f32
      %82 = vector.broadcast %cst_36 : f32 to vector<8x128xf32>
      %83 = arith.cmpf oge, %81, %82 : vector<8x128xf32>
      %cst_37 = arith.constant 2.000000e-01 : f32
      %84 = vector.broadcast %cst_37 : f32 to vector<8x128xf32>
      %85 = arith.mulf %84, %81 : vector<8x128xf32>
      %86 = arith.select %83, %81, %85 : vector<8x128xi1>, vector<8x128xf32>
      %c0_38 = arith.constant 0 : index
      %c0_39 = arith.constant 0 : index
      %87 = vector.load %arg7[%c0_38, %c0_39] : memref<8x128xf32, #tpu.memory_space<vmem>>, vector<8x128xf32>
      tpu.vector_store %arg7[%c0_38, %c0_39], %86 {strides = array<i32>} : memref<8x128xf32, #tpu.memory_space<vmem>>, vector<8x128xf32>,
    } else {
    }
    return
  }
  func.func @transform_0(%arg0: i32) -> (i32, i32) {
    %c0_i32 = arith.constant 0 : i32
    %c0_i32_0 = arith.constant 0 : i32
    %c0_i32_1 = arith.constant 0 : i32
    return %c0_i32, %c0_i32_0 : i32, i32
  }
  func.func @transform_1(%arg0: i32) -> (i32, i32) {
    %c0_i32 = arith.constant 0 : i32
    %c0_i32_0 = arith.constant 0 : i32
    return %c0_i32, %arg0 : i32, i32
  }
  func.func @transform_2(%arg0: i32) -> (i32, i32) {
    %c0_i32 = arith.constant 0 : i32
    %c0_i32_0 = arith.constant 0 : i32
    return %c0_i32, %arg0 : i32, i32
  }
  func.func @transform_3(%arg0: i32) -> (i32, i32) {
    %c0_i32 = arith.constant 0 : i32
    %c0_i32_0 = arith.constant 0 : i32
    return %arg0, %c0_i32 : i32, i32
  }
  func.func @transform_4(%arg0: i32) -> (i32, i32) {
    %c0_i32 = arith.constant 0 : i32
    %c0_i32_0 = arith.constant 0 : i32
    %c0_i32_1 = arith.constant 0 : i32
    return %c0_i32, %c0_i32_0 : i32, i32
  }
  func.func @transform_5(%arg0: i32) -> (i32, i32) {
    %c0_i32 = arith.constant 0 : i32
    %c0_i32_0 = arith.constant 0 : i32
    %c0_i32_1 = arith.constant 0 : i32
    return %c0_i32, %c0_i32_0 : i32, i32
  }
  func.func @transform_6(%arg0: i32) -> (i32, i32) {
    %c0_i32 = arith.constant 0 : i32
    %c0_i32_0 = arith.constant 0 : i32
    %c0_i32_1 = arith.constant 0 : i32
    return %c0_i32, %c0_i32_0 : i32, i32
  }
}

</mosaic_0001>

<llo_original>
// kernel: _resblock_call.1
$region0: #{_resblock_call.1}
  #allocation0 [shape = 'u32[]', space=smem, size = 0x4, offset = 0x4, fixed_abs, tag = 'smem constant byte address 0x4 - core index']
  #allocation1 [shape = 'u32[144,128]{1,0:T(1,128)}', space=vmem, size = 0x12000, scoped, tag = 'internal scratch']
  #allocation2 [shape = 'f32[8,128]{1,0:T(8,128)}', space=vmem, size = 0x1000, scoped, tag = 'scratch operand']
  %s0 = inlined_call_operand.vmem [shape: bf16[8,128], index: 0, kind: input, shape index: {}]
  %s1 = inlined_call_operand.hbm [shape: bf16[128,128], index: 1, kind: input, shape index: {}]
  %s2 = inlined_call_operand.vmem [shape: f32[3,128], index: 2, kind: input, shape index: {}]
  %s3 = inlined_call_operand.hbm [shape: bf16[128,128], index: 3, kind: input, shape index: {}]
  %s4 = inlined_call_operand.vmem [shape: f32[4,128], index: 4, kind: input, shape index: {}]
  %s5 = inlined_call_operand.hbm [shape: bf16[128,128], index: 5, kind: input, shape index: {}]
  %s6 = inlined_call_operand.hbm [shape: f32[8,128], index: 6, kind: output, shape index: {}]
  %s7 = sld [smem:[#allocation0]]
  $region54: #{_resblock_call.1} parent=0
    _
  %s9 = ssub.s32 1, %s7
  %s10 = scalar_select 0, %s9, %s7
  $region1: #{_resblock_call.1} parent=0
    #allocation3 [shape = 'u8[32768]{0}', space=vmem, size = 0x8000, scoped, tag = 'input window, operand 1, single buffered']
    #allocation4 [shape = 's32[1]{0}', space=sflag, size = 0x4, scoped, tag = 'scoped memory for _resblock_call.1']
    #allocation5 [shape = 's32[1]{0}', space=sflag, size = 0x4, scoped, tag = 'scoped memory for _resblock_call.1']
    #allocation6 [shape = 'u8[32768]{0}', space=vmem, size = 0x8000, scoped, tag = 'input window, operand 3, single buffered']
    #allocation7 [shape = 's32[1]{0}', space=sflag, size = 0x4, scoped, tag = 'scoped memory for _resblock_call.1']
    #allocation8 [shape = 'u8[32768]{0}', space=vmem, size = 0x8000, scoped, tag = 'input window, operand 5, single buffered']
    #allocation9 [shape = 'u8[4096]{0}', space=vmem, size = 0x1000, scoped, tag = 'output window, operand 0, single buffered']
    %11 = vsyncpa [#allocation4], 0
    %12 = vsyncpa [#allocation7], 0
    %13 = vsyncpa [#allocation5], 0
    // Predicated region
    $region2: #{_resblock_call.1} parent=1 // pred_check
      _
    $region3: #{_resblock_call.1} parent=1 // pred_check_branch
      %15 = sbr.rel (0) target = $region5
    $region4: #{_resblock_call.1} parent=1 // pred_region
      _
    $region5: #{_resblock_call.1} parent=1 // pred_fallthru
      _
    // Predicated region
    $region6: #{_resblock_call.1} parent=1 // pred_check
      _
    $region7: #{_resblock_call.1} parent=1 // pred_check_branch
      %17 = sbr.rel (0) target = $region9
    $region8: #{_resblock_call.1} parent=1 // pred_region
      %s19 = ssub.s32 1024, 1024
      %20 = vsyncadd [#allocation4], %s19
      %s21 = sshll.u32 [#allocation3], 4
      %s22 = int_to_ptr.vmem [resolvable:$true] %s21
      %27 = dma.hbm_to_vmem [thread:$0]  %s1, 1024, %s22, [#allocation4], 64, 64, 4
    $region9: #{_resblock_call.1} parent=1 // pred_fallthru
      _
    // Predicated region
    $region10: #{_resblock_call.1} parent=1 // pred_check
      _
    $region11: #{_resblock_call.1} parent=1 // pred_check_branch
      %29 = sbr.rel (0) target = $region13
    $region12: #{_resblock_call.1} parent=1 // pred_region
      _
    $region13: #{_resblock_call.1} parent=1 // pred_fallthru
      _
    // Predicated region
    $region14: #{_resblock_call.1} parent=1 // pred_check
      _
    $region15: #{_resblock_call.1} parent=1 // pred_check_branch
      %31 = sbr.rel (0) target = $region17
    $region16: #{_resblock_call.1} parent=1 // pred_region
      %s33 = ssub.s32 1024, 1024
      %34 = vsyncadd [#allocation7], %s33
      %s35 = sshll.u32 [#allocation6], 4
      %s36 = int_to_ptr.vmem [resolvable:$true] %s35
      %41 = dma.hbm_to_vmem [thread:$0]  %s3, 1024, %s36, [#allocation7], 64, 64, 4
    $region17: #{_resblock_call.1} parent=1 // pred_fallthru
      _
    // Predicated region
    $region18: #{_resblock_call.1} parent=1 // pred_check
      _
    $region19: #{_resblock_call.1} parent=1 // pred_check_branch
      %43 = sbr.rel (0) target = $region21
    $region20: #{_resblock_call.1} parent=1 // pred_region
      _
    $region21: #{_resblock_call.1} parent=1 // pred_fallthru
      _
    // Predicated region
    $region22: #{_resblock_call.1} parent=1 // pred_check
      _
    $region23: #{_resblock_call.1} parent=1 // pred_check_branch
      %45 = sbr.rel (0) target = $region25
    $region24: #{_resblock_call.1} parent=1 // pred_region
      %s47 = ssub.s32 1024, 1024
      %48 = vsyncadd [#allocation7], %s47
      %s49 = sshll.u32 [#allocation8], 4
      %s50 = int_to_ptr.vmem [resolvable:$true] %s49
      %55 = dma.hbm_to_vmem [thread:$0]  %s5, 1024, %s50, [#allocation7], 64, 64, 4
    $region25: #{_resblock_call.1} parent=1 // pred_fallthru
      _
    // Predicated region
    $region26: #{_resblock_call.1} parent=1 // pred_check
      _
    $region27: #{_resblock_call.1} parent=1 // pred_check_branch
      %57 = sbr.rel (0) target = $region29
    $region28: #{_resblock_call.1} parent=1 // pred_region
      %58 = dma.done [#allocation4], 1024
    $region29: #{_resblock_call.1} parent=1 // pred_fallthru
      _
    // Predicated region
    $region30: #{_resblock_call.1} parent=1 // pred_check
      _
    $region31: #{_resblock_call.1} parent=1 // pred_check_branch
      %60 = sbr.rel (0) target = $region33
    $region32: #{_resblock_call.1} parent=1 // pred_region
      %61 = dma.done [#allocation7], 1024
    $region33: #{_resblock_call.1} parent=1 // pred_fallthru
      _
    // Predicated region
    $region34: #{_resblock_call.1} parent=1 // pred_check
      _
    $region35: #{_resblock_call.1} parent=1 // pred_check_branch
      %63 = sbr.rel (0) target = $region37
    $region36: #{_resblock_call.1} parent=1 // pred_region
      %64 = dma.done [#allocation7], 1024
    $region37: #{_resblock_call.1} parent=1 // pred_fallthru
      _
    %p66 = scmp.eq.s32.totalorder 0, 0
    // Predicated region
    $region38: #{_resblock_call.1} parent=1 // pred_check
      %p67 = pneg %p66
    $region39: #{_resblock_call.1} parent=1 // pred_check_branch
      %69 = sbr.rel (%p67) target = $region41
    $region40: #{_resblock_call.1} parent=1 // pred_region
      %70 = vst [vmem:[#allocation2] sm:$0xff] 0.0
    $region41: #{_resblock_call.1} parent=1 // pred_fallthru
      _
    %v71 = vld [vmem:[%s0] sm:$0xf]
    %v72 = vld [vmem:[%s2] sm:$0x7]
    %v73 = vld [vmem:[#allocation3] sm:$0xf]
    %v74 = vld [vmem:[#allocation3 + $0x4] sm:$0xf]
    %v75 = vld [vmem:[#allocation3 + $0x8] sm:$0xf]
    %v76 = vld [vmem:[#allocation3 + $0xc] sm:$0xf]
    %v77 = vld [vmem:[#allocation3 + $0x10] sm:$0xf]
    %v78 = vld [vmem:[#allocation3 + $0x14] sm:$0xf]
    %v79 = vld [vmem:[#allocation3 + $0x18] sm:$0xf]
    %v80 = vld [vmem:[#allocation3 + $0x1c] sm:$0xf]
    %v81 = vld [vmem:[#allocation3 + $0x20] sm:$0xf]
    %v82 = vld [vmem:[#allocation3 + $0x24] sm:$0xf]
    %v83 = vld [vmem:[#allocation3 + $0x28] sm:$0xf]
    %v84 = vld [vmem:[#allocation3 + $0x2c] sm:$0xf]
    %v85 = vld [vmem:[#allocation3 + $0x30] sm:$0xf]
    %v86 = vld [vmem:[#allocation3 + $0x34] sm:$0xf]
    %v87 = vld [vmem:[#allocation3 + $0x38] sm:$0xf]
    %v88 = vld [vmem:[#allocation3 + $0x3c] sm:$0xf]
    %v89 = vlaneseq
    %v90 = vshrl.u32 %v89, 7
    %v91 = vsub.s32 0, %v90
    %v92 = vrot.slane %v72, %v91
    %v109 = vunpack.c.l.b16 %v73
    %v110 = vunpack.c.l.b16 %v74
    %v111 = vunpack.c.l.b16 %v75
    %v112 = vunpack.c.l.b16 %v76
    %v113 = vunpack.c.l.b16 %v77
    %v114 = vunpack.c.l.b16 %v78
    %v115 = vunpack.c.l.b16 %v79
    %v116 = vunpack.c.l.b16 %v80
    %v117 = vunpack.c.l.b16 %v81
    %v118 = vunpack.c.l.b16 %v82
    %v119 = vunpack.c.l.b16 %v83
    %v120 = vunpack.c.l.b16 %v84
    %v121 = vunpack.c.l.b16 %v85
    %v122 = vunpack.c.l.b16 %v86
    %v123 = vunpack.c.l.b16 %v87
    %v124 = vunpack.c.l.b16 %v88
    %v125 = vpack.c.b16 %v110, %v109
    %v126 = vpack.c.b16 %v112, %v111
    %v127 = vpack.c.b16 %v114, %v113
    %v128 = vpack.c.b16 %v116, %v115
    %v129 = vpack.c.b16 %v118, %v117
    %v130 = vpack.c.b16 %v120, %v119
    %v131 = vpack.c.b16 %v122, %v121
    %v132 = vpack.c.b16 %v124, %v123
    %141 = vmatprep.subr.bf16.mxu0 0
    %142 = vmatpush1.bf16.msra.mxu0 %v125
    %143 = vmatprep.subr.bf16.mxu0 0
    %144 = vmatpush1.bf16.msra.mxu0 %v126
    %145 = vmatprep.subr.bf16.mxu0 0
    %146 = vmatpush1.bf16.msra.mxu0 %v127
    %147 = vmatprep.subr.bf16.mxu0 0
    %148 = vmatpush1.bf16.msra.mxu0 %v128
    %149 = vmatprep.subr.bf16.mxu0 0
    %150 = vmatpush1.bf16.msra.mxu0 %v129
    %151 = vmatprep.subr.bf16.mxu0 0
    %152 = vmatpush1.bf16.msra.mxu0 %v130
    %153 = vmatprep.subr.bf16.mxu0 0
    %154 = vmatpush1.bf16.msra.mxu0 %v131
    %155 = vmatprep.subr.bf16.mxu0 0
    %156 = vmatpush1.bf16.msra.mxu0 %v132
    %157 = vmatprep.subr.bf16.mxu0 0
    %158 = vmatpush1.bf16.msra.mxu0 0
    %159 = vmatprep.subr.bf16.mxu0 0
    %160 = vmatpush1.bf16.msra.mxu0 0
    %161 = vmatprep.subr.bf16.mxu0 0
    %162 = vmatpush1.bf16.msra.mxu0 0
    %163 = vmatprep.subr.bf16.mxu0 0
    %164 = vmatpush1.bf16.msra.mxu0 0
    %165 = vmatprep.subr.bf16.mxu0 0
    %166 = vmatpush1.bf16.msra.mxu0 0
    %167 = vmatprep.subr.bf16.mxu0 0
    %168 = vmatpush1.bf16.msra.mxu0 0
    %169 = vmatprep.subr.bf16.mxu0 0
    %170 = vmatpush1.bf16.msra.mxu0 0
    %171 = vmatprep.subr.bf16.mxu0 0
    %172 = vmatpush1.bf16.msra.mxu0 0
    %173 = vmatprep.mubr.bf16.mxu0 0
    %174 = vmatmul.mubr.bf16.gmra.mrb[0].mxu0 %v71
    %v175 = vpop.f32.mrb[0].mxu0
    %v176 = vadd.f32 %v92, %v175
    %v177 = vpop.f32.mrb[0].mxu0
    %v178 = vpop.f32.mrb[0].mxu0
    %v179 = vpop.f32.mrb[0].mxu0
    %180 = vdwg.mxu0
    %v181 = vrot.slane %v176, 4
    %v182 = vadd.f32 %v176, %v181
    %v183 = vrot.slane %v182, 2
    %v184 = vadd.f32 %v182, %v183
    %v185 = vrot.slane %v184, 1
    %v186 = vadd.f32 %v184, %v185
    %v187 = vmul.f32 %v186, 0.125
    %v188 = vsub.f32 %v176, %v187
    %v189 = vmul.f32 %v188, %v188
    %v190 = vrot.slane %v189, 4
    %v191 = vadd.f32 %v189, %v190
    %v192 = vrot.slane %v191, 2
    %v193 = vadd.f32 %v191, %v192
    %v194 = vrot.slane %v193, 1
    %v195 = vadd.f32 %v193, %v194
    %v196 = vmul.f32 %v195, 0.125
    %v197 = vadd.f32 %v196, 1e-05
    %v198 = vrsqrt.pop %v197
    %v199 = vmul.f32 %v198, %v72
    %v200 = vlaneseq
    %v201 = vshrl.u32 %v200, 7
    %v202 = vsub.s32 1, %v201
    %v203 = vrot.slane %v199, %v202
    %v204 = vmul.f32 %v188, %v203
    %v205 = vlaneseq
    %v206 = vshrl.u32 %v205, 7
    %v207 = vsub.s32 2, %v206
    %v208 = vrot.slane %v72, %v207
    %v209 = vadd.f32 %v204, %v208
    %vm210 = vcmp.ge.f32.partialorder %v209, 0.0
    %v211 = vmul.f32 %v209, 0.2
    %v212 = vsel %vm210, %v209, %v211
    %v213 = vld [vmem:[#allocation2] sm:$0xff]
    %v214 = vpack.c.bf16 %v212, %v212
    %v215 = vld [vmem:[#allocation6] sm:$0xf]
    %v216 = vld [vmem:[#allocation6 + $0x4] sm:$0xf]
    %v217 = vld [vmem:[#allocation6 + $0x8] sm:$0xf]
    %v218 = vld [vmem:[#allocation6 + $0xc] sm:$0xf]
    %v219 = vld [vmem:[#allocation6 + $0x10] sm:$0xf]
    %v220 = vld [vmem:[#allocation6 + $0x14] sm:$0xf]
    %v221 = vld [vmem:[#allocation6 + $0x18] sm:$0xf]
    %v222 = vld [vmem:[#allocation6 + $0x1c] sm:$0xf]
    %v223 = vld [vmem:[#allocation6 + $0x20] sm:$0xf]
    %v224 = vld [vmem:[#allocation6 + $0x24] sm:$0xf]
    %v225 = vld [vmem:[#allocation6 + $0x28] sm:$0xf]
    %v226 = vld [vmem:[#allocation6 + $0x2c] sm:$0xf]
    %v227 = vld [vmem:[#allocation6 + $0x30] sm:$0xf]
    %v228 = vld [vmem:[#allocation6 + $0x34] sm:$0xf]
    %v229 = vld [vmem:[#allocation6 + $0x38] sm:$0xf]
    %v230 = vld [vmem:[#allocation6 + $0x3c] sm:$0xf]
    %v247 = vunpack.c.l.b16 %v215
    %v248 = vunpack.c.l.b16 %v216
    %v249 = vunpack.c.l.b16 %v217
    %v250 = vunpack.c.l.b16 %v218
    %v251 = vunpack.c.l.b16 %v219
    %v252 = vunpack.c.l.b16 %v220
    %v253 = vunpack.c.l.b16 %v221
    %v254 = vunpack.c.l.b16 %v222
    %v255 = vunpack.c.l.b16 %v223
    %v256 = vunpack.c.l.b16 %v224
    %v257 = vunpack.c.l.b16 %v225
    %v258 = vunpack.c.l.b16 %v226
    %v259 = vunpack.c.l.b16 %v227
    %v260 = vunpack.c.l.b16 %v228
    %v261 = vunpack.c.l.b16 %v229
    %v262 = vunpack.c.l.b16 %v230
    %v263 = vpack.c.b16 %v248, %v247
    %v264 = vpack.c.b16 %v250, %v249
    %v265 = vpack.c.b16 %v252, %v251
    %v266 = vpack.c.b16 %v254, %v253
    %v267 = vpack.c.b16 %v256, %v255
    %v268 = vpack.c.b16 %v258, %v257
    %v269 = vpack.c.b16 %v260, %v259
    %v270 = vpack.c.b16 %v262, %v261
    %279 = vmatprep.subr.bf16.mxu0 0
    %280 = vmatpush1.bf16.msra.mxu0 %v263
    %281 = vmatprep.subr.bf16.mxu0 0
    %282 = vmatpush1.bf16.msra.mxu0 %v264
    %283 = vmatprep.subr.bf16.mxu0 0
    %284 = vmatpush1.bf16.msra.mxu0 %v265
    %285 = vmatprep.subr.bf16.mxu0 0
    %286 = vmatpush1.bf16.msra.mxu0 %v266
    %287 = vmatprep.subr.bf16.mxu0 0
    %288 = vmatpush1.bf16.msra.mxu0 %v267
    %289 = vmatprep.subr.bf16.mxu0 0
    %290 = vmatpush1.bf16.msra.mxu0 %v268
    %291 = vmatprep.subr.bf16.mxu0 0
    %292 = vmatpush1.bf16.msra.mxu0 %v269
    %293 = vmatprep.subr.bf16.mxu0 0
    %294 = vmatpush1.bf16.msra.mxu0 %v270
    %295 = vmatprep.subr.bf16.mxu0 0
    %296 = vmatpush1.bf16.msra.mxu0 0
    %297 = vmatprep.subr.bf16.mxu0 0
    %298 = vmatpush1.bf16.msra.mxu0 0
    %299 = vmatprep.subr.bf16.mxu0 0
    %300 = vmatpush1.bf16.msra.mxu0 0
    %301 = vmatprep.subr.bf16.mxu0 0
    %302 = vmatpush1.bf16.msra.mxu0 0
    %303 = vmatprep.subr.bf16.mxu0 0
    %304 = vmatpush1.bf16.msra.mxu0 0
    %305 = vmatprep.subr.bf16.mxu0 0
    %306 = vmatpush1.bf16.msra.mxu0 0
    %307 = vmatprep.subr.bf16.mxu0 0
    %308 = vmatpush1.bf16.msra.mxu0 0
    %309 = vmatprep.subr.bf16.mxu0 0
    %310 = vmatpush1.bf16.msra.mxu0 0
    %311 = vmatprep.mubr.bf16.mxu0 0
    %312 = vmatmul.mubr.bf16.gmra.mrb[0].mxu0 %v214
    %v313 = vpop.f32.mrb[0].mxu0
    %v314 = vadd.f32 0.0, %v313
    %v315 = vpop.f32.mrb[0].mxu0
    %v316 = vpop.f32.mrb[0].mxu0
    %v317 = vpop.f32.mrb[0].mxu0
    %318 = vdwg.mxu0
    %v319 = vadd.f32 %v213, %v314
    %320 = vst [vmem:[#allocation2] sm:$0xff] %v319
    // Predicated region
    $region42: #{_resblock_call.1} parent=1 // pred_check
      %p321 = pneg %p66
    $region43: #{_resblock_call.1} parent=1 // pred_check_branch
      %323 = sbr.rel (%p321) target = $region45
    $region44: #{_resblock_call.1} parent=1 // pred_region
      %v324 = vld [vmem:[%s4] sm:$0xf]
      %v325 = vld [vmem:[#allocation2] sm:$0xff]
      %v326 = vlaneseq
      %v327 = vshrl.u32 %v326, 7
      %v328 = vsub.s32 0, %v327
      %v329 = vrot.slane %v324, %v328
      %v330 = vadd.f32 %v325, %v329
      %v331 = vrot.slane %v330, 4
      %v332 = vadd.f32 %v330, %v331
      %v333 = vrot.slane %v332, 2
      %v334 = vadd.f32 %v332, %v333
      %v335 = vrot.slane %v334, 1
      %v336 = vadd.f32 %v334, %v335
      %v337 = vmul.f32 %v336, 0.125
      %v338 = vsub.f32 %v330, %v337
      %v339 = vmul.f32 %v338, %v338
      %v340 = vrot.slane %v339, 4
      %v341 = vadd.f32 %v339, %v340
      %v342 = vrot.slane %v341, 2
      %v343 = vadd.f32 %v341, %v342
      %v344 = vrot.slane %v343, 1
      %v345 = vadd.f32 %v343, %v344
      %v346 = vmul.f32 %v345, 0.125
      %v347 = vadd.f32 %v346, 1e-05
      %v348 = vrsqrt.pop %v347
      %v349 = vmul.f32 %v348, %v324
      %v350 = vlaneseq
      %v351 = vshrl.u32 %v350, 7
      %v352 = vsub.s32 1, %v351
      %v353 = vrot.slane %v349, %v352
      %v354 = vmul.f32 %v338, %v353
      %v355 = vlaneseq
      %v356 = vshrl.u32 %v355, 7
      %v357 = vsub.s32 2, %v356
      %v358 = vrot.slane %v324, %v357
      %v359 = vadd.f32 %v354, %v358
      %v360 = vld [vmem:[#allocation8] sm:$0xf]
      %v361 = vld [vmem:[#allocation8 + $0x4] sm:$0xf]
      %v362 = vld [vmem:[#allocation8 + $0x8] sm:$0xf]
      %v363 = vld [vmem:[#allocation8 + $0xc] sm:$0xf]
      %v364 = vld [vmem:[#allocation8 + $0x10] sm:$0xf]
      %v365 = vld [vmem:[#allocation8 + $0x14] sm:$0xf]
      %v366 = vld [vmem:[#allocation8 + $0x18] sm:$0xf]
      %v367 = vld [vmem:[#allocation8 + $0x1c] sm:$0xf]
      %v368 = vld [vmem:[#allocation8 + $0x20] sm:$0xf]
      %v369 = vld [vmem:[#allocation8 + $0x24] sm:$0xf]
      %v370 = vld [vmem:[#allocation8 + $0x28] sm:$0xf]
      %v371 = vld [vmem:[#allocation8 + $0x2c] sm:$0xf]
      %v372 = vld [vmem:[#allocation8 + $0x30] sm:$0xf]
      %v373 = vld [vmem:[#allocation8 + $0x34] sm:$0xf]
      %v374 = vld [vmem:[#allocation8 + $0x38] sm:$0xf]
      %v375 = vld [vmem:[#allocation8 + $0x3c] sm:$0xf]
      %v376 = vlaneseq
      %v377 = vshrl.u32 %v376, 7
      %v378 = vsub.s32 3, %v377
      %v379 = vrot.slane %v324, %v378
      %v396 = vunpack.c.l.b16 %v360
      %v397 = vunpack.c.l.b16 %v361
      %v398 = vunpack.c.l.b16 %v362
      %v399 = vunpack.c.l.b16 %v363
      %v400 = vunpack.c.l.b16 %v364
      %v401 = vunpack.c.l.b16 %v365
      %v402 = vunpack.c.l.b16 %v366
      %v403 = vunpack.c.l.b16 %v367
      %v404 = vunpack.c.l.b16 %v368
      %v405 = vunpack.c.l.b16 %v369
      %v406 = vunpack.c.l.b16 %v370
      %v407 = vunpack.c.l.b16 %v371
      %v408 = vunpack.c.l.b16 %v372
      %v409 = vunpack.c.l.b16 %v373
      %v410 = vunpack.c.l.b16 %v374
      %v411 = vunpack.c.l.b16 %v375
      %v412 = vpack.c.b16 %v397, %v396
      %v413 = vpack.c.b16 %v399, %v398
      %v414 = vpack.c.b16 %v401, %v400
      %v415 = vpack.c.b16 %v403, %v402
      %v416 = vpack.c.b16 %v405, %v404
      %v417 = vpack.c.b16 %v407, %v406
      %v418 = vpack.c.b16 %v409, %v408
      %v419 = vpack.c.b16 %v411, %v410
      %428 = vmatprep.subr.bf16.mxu0 0
      %429 = vmatpush1.bf16.msra.mxu0 %v412
      %430 = vmatprep.subr.bf16.mxu0 0
      %431 = vmatpush1.bf16.msra.mxu0 %v413
      %432 = vmatprep.subr.bf16.mxu0 0
      %433 = vmatpush1.bf16.msra.mxu0 %v414
      %434 = vmatprep.subr.bf16.mxu0 0
      %435 = vmatpush1.bf16.msra.mxu0 %v415
      %436 = vmatprep.subr.bf16.mxu0 0
      %437 = vmatpush1.bf16.msra.mxu0 %v416
      %438 = vmatprep.subr.bf16.mxu0 0
      %439 = vmatpush1.bf16.msra.mxu0 %v417
      %440 = vmatprep.subr.bf16.mxu0 0
      %441 = vmatpush1.bf16.msra.mxu0 %v418
      %442 = vmatprep.subr.bf16.mxu0 0
      %443 = vmatpush1.bf16.msra.mxu0 %v419
      %444 = vmatprep.subr.bf16.mxu0 0
      %445 = vmatpush1.bf16.msra.mxu0 0
      %446 = vmatprep.subr.bf16.mxu0 0
      %447 = vmatpush1.bf16.msra.mxu0 0
      %448 = vmatprep.subr.bf16.mxu0 0
      %449 = vmatpush1.bf16.msra.mxu0 0
      %450 = vmatprep.subr.bf16.mxu0 0
      %451 = vmatpush1.bf16.msra.mxu0 0
      %452 = vmatprep.subr.bf16.mxu0 0
      %453 = vmatpush1.bf16.msra.mxu0 0
      %454 = vmatprep.subr.bf16.mxu0 0
      %455 = vmatpush1.bf16.msra.mxu0 0
      %456 = vmatprep.subr.bf16.mxu0 0
      %457 = vmatpush1.bf16.msra.mxu0 0
      %458 = vmatprep.subr.bf16.mxu0 0
      %459 = vmatpush1.bf16.msra.mxu0 0
      %460 = vmatprep.mubr.bf16.mxu0 0
      %461 = vmatmul.mubr.bf16.gmra.mrb[0].mxu0 %v71
      %v462 = vpop.f32.mrb[0].mxu0
      %v463 = vadd.f32 %v379, %v462
      %v464 = vpop.f32.mrb[0].mxu0
      %v465 = vpop.f32.mrb[0].mxu0
      %v466 = vpop.f32.mrb[0].mxu0
      %467 = vdwg.mxu0
      %vm468 = vcmp.ge.f32.partialorder %v463, 0.0
      %v469 = vmul.f32 %v463, 0.2
      %v470 = vsel %vm468, %v463, %v469
      %v471 = vadd.f32 %v470, %v359
      %vm472 = vcmp.ge.f32.partialorder %v471, 0.0
      %v473 = vmul.f32 %v471, 0.2
      %v474 = vsel %vm472, %v471, %v473
      %475 = vst [vmem:[#allocation9] sm:$0xff] %v474
    $region45: #{_resblock_call.1} parent=1 // pred_fallthru
      _
    // Predicated region
    $region46: #{_resblock_call.1} parent=1 // pred_check
      _
    $region47: #{_resblock_call.1} parent=1 // pred_check_branch
      %477 = sbr.rel (0) target = $region49
    $region48: #{_resblock_call.1} parent=1 // pred_region
      %s479 = ssub.s32 128, 128
      %480 = vsyncadd [#allocation5], %s479
      %s482 = sshll.u32 [#allocation9], 4
      %s483 = int_to_ptr.vmem [resolvable:$true] %s482
      %485 = dma.vmem_to_hbm [thread:$0]  %s483, 128, %s6, [#allocation5]
    $region49: #{_resblock_call.1} parent=1 // pred_fallthru
      _
    // Predicated region
    $region50: #{_resblock_call.1} parent=1 // pred_check
      _
    $region51: #{_resblock_call.1} parent=1 // pred_check_branch
      %487 = sbr.rel (0) target = $region53
    $region52: #{_resblock_call.1} parent=1 // pred_region
      %488 = dma.done [#allocation5], 128
    $region53: #{_resblock_call.1} parent=1 // pred_fallthru
      _
    %489 = vsyncpa [#allocation4], 1
    %490 = vsyncpa [#allocation7], 1
    %491 = vsyncpa [#allocation5], 1

</llo_original>
